<compile_context>
chip_gen: v7x
topology: tpu7x:2x2x1
jax: 0.10.0
libtpu: 0.0.40
codegen_flags: <defaults>
</compile_context>

<pallas_src>
import jax
import jax.numpy as jnp
from jax.experimental import pallas as pl
from jax.experimental.pallas import tpu as pltpu

INPUT_STATE = 4          # logical input feature dim (as in the PyTorch module)

_BATCH_BUCKETS = (8, 16, 32, 64, 96, 128, 192, 256, 384, 512, 768, 1024)
_MAX_TILE = 1024         # batches above this tile at 1024 rows (>= 2 grid steps)


def _round_up(n, m):
    return ((n + m - 1) // m) * m


def _choose_batch_tiling(b):
    """Return (padded_batch, batch_tile), bucketed to a small fixed set of shapes."""
    for bucket in _BATCH_BUCKETS:
        if b <= bucket:
            return bucket, bucket            # single grid step
    b_pad = _round_up(b, _MAX_TILE)
    return b_pad, _MAX_TILE                  # >= 2 steps: "parallel" axis -> both v7x TCs


def _net_kernel(x_ref, w1_ref, b1_ref, w2_ref, b2_ref, w3_ref, b3_ref, out_ref):
    """Fused 3-layer MLP on one batch tile."""
    x = x_ref[...]                                   # (TB, 4)    f32
    w1 = w1_ref[...]                                 # (4, 32)    f32

    # fc1: K=4 -> VPU broadcast-multiply-accumulate chain (avoids an MXU round trip).
    # TODO(synk): on v6e/v7x with TB >= 128, re-benchmark jnp.dot(x, w1) on the MXU instead.
    tb = x.shape[0]
    h1 = jnp.broadcast_to(b1_ref[...], (tb, w1.shape[1]))         # (TB, 32)
    for k in range(w1.shape[0]):                                   # static, 4 taps
        h1 = h1 + x[:, k:k + 1] * w1[k:k + 1, :]
    h1 = jnp.maximum(h1, 0.0)                                      # ReLU

    # fc2 / fc3 on the MXU with f32 accumulation.
    h2 = jnp.dot(h1, w2_ref[...], preferred_element_type=jnp.float32) + b2_ref[...]
    h2 = jnp.maximum(h2, 0.0)                                      # (TB, 128)

    q = jnp.dot(h2, w3_ref[...], preferred_element_type=jnp.float32) + b3_ref[...]
    out_ref[...] = q.astype(out_ref.dtype)                         # (TB, 8)


def prepare_params(params):
    """Zero-pad logical params (PyTorch-shaped, stored as [in, out]) to TPU-friendly shapes."""
    def pad2(a, rows, cols):
        out = jnp.zeros((rows, cols), a.dtype)
        return out.at[: a.shape[0], : a.shape[1]].set(a)

    w1, b1 = params["w1"], params["b1"]          # (4, 32), (1, 32)
    w2, b2 = params["w2"], params["b2"]          # (32, H), (1, H)
    w3, b3 = params["w3"], params["b3"]          # (H, A),  (1, A)

    hidden = w2.shape[1]
    num_actions = w3.shape[1]
    h_pad = _round_up(hidden, 128)               # 50 -> 128 (MXU-friendly K for fc3)
    a_pad = _round_up(num_actions, 8)            # 2  -> 8   (narrow output writeback)

    return {
        "w1": jnp.asarray(w1, jnp.float32),                     # (4, 32) natural
        "b1": jnp.asarray(b1, jnp.float32),                     # (1, 32)
        "w2": pad2(w2, w2.shape[0], h_pad),                     # (32, 128)
        "b2": pad2(b2, 1, h_pad),                               # (1, 128)
        "w3": pad2(w3, h_pad, a_pad),                           # (128, 8)
        "b3": pad2(b3, 1, a_pad),                               # (1, 8)
        "num_actions": int(num_actions),
    }


def net_forward(x, padded_params):
    """x: (B, 4) float32.  padded_params: output of prepare_params.  Returns (B, num_actions)."""
    w1, b1 = padded_params["w1"], padded_params["b1"]
    w2, b2 = padded_params["w2"], padded_params["b2"]
    w3, b3 = padded_params["w3"], padded_params["b3"]
    num_actions = padded_params["num_actions"]

    B, in_dim = x.shape
    a_pad = w3.shape[1]
    b_pad, tb = _choose_batch_tiling(B)

    # Only the batch dim is padded (feature dim stays at its natural width of 4).
    x_p = x if b_pad == B else jnp.pad(x, ((0, b_pad - B), (0, 0)))

    out = pl.pallas_call(
        _net_kernel,
        out_shape=jax.ShapeDtypeStruct((b_pad, a_pad), jnp.float32),
        grid=(b_pad // tb,),
        in_specs=[
            pl.BlockSpec((tb, in_dim), lambda i: (i, 0)),    # x: tiled over batch, 4-wide
            pl.BlockSpec(w1.shape, lambda i: (0, 0)),        # weights/biases: VMEM-resident
            pl.BlockSpec(b1.shape, lambda i: (0, 0)),
            pl.BlockSpec(w2.shape, lambda i: (0, 0)),
            pl.BlockSpec(b2.shape, lambda i: (0, 0)),
            pl.BlockSpec(w3.shape, lambda i: (0, 0)),
            pl.BlockSpec(b3.shape, lambda i: (0, 0)),
        ],
        out_specs=pl.BlockSpec((tb, a_pad), lambda i: (i, 0)),
        compiler_params=pltpu.CompilerParams(
            dimension_semantics=("parallel",),               # shard batch steps across v7x TCs
        ),
    )(x_p, w1, b1, w2, b2, w3, b3)

    return out[:B, :num_actions]


def init_params(key, num_actions=2, hidden_layer_size=50):
    """PyTorch nn.Linear-style init (U(-1/sqrt(fan_in), 1/sqrt(fan_in))), stored as [in, out]."""
    dims = [(INPUT_STATE, 32), (32, hidden_layer_size), (hidden_layer_size, num_actions)]
    params = {}
    keys = jax.random.split(key, 2 * len(dims))
    for i, (fan_in, fan_out) in enumerate(dims):
        bound = 1.0 / jnp.sqrt(jnp.float32(fan_in))
        params[f"w{i + 1}"] = jax.random.uniform(
            keys[2 * i], (fan_in, fan_out), jnp.float32, -bound, bound)
        params[f"b{i + 1}"] = jax.random.uniform(
            keys[2 * i + 1], (1, fan_out), jnp.float32, -bound, bound)
    return params


def net_forward_ref(x, params):
    """Plain-JAX reference (logical, unpadded params)."""
    h1 = jnp.maximum(x @ params["w1"] + params["b1"], 0.0)
    h2 = jnp.maximum(h1 @ params["w2"] + params["b2"], 0.0)
    return h2 @ params["w3"] + params["b3"]


if __name__ == "__main__":
    key = jax.random.PRNGKey(0)
    pkey, xkey1, xkey2 = jax.random.split(key, 3)

    num_actions = 2
    hidden_layer_size = 50

    params = init_params(pkey, num_actions=num_actions, hidden_layer_size=hidden_layer_size)
    padded = prepare_params(params)

    # Small per-env-step batch (single grid step, no padding at all).
    states_small = jax.random.normal(xkey1, (8, INPUT_STATE), dtype=jnp.float32)
    q_small = jax.block_until_ready(net_forward(states_small, padded))
    assert q_small.shape == (8, num_actions)
    assert jnp.allclose(q_small, net_forward_ref(states_small, params), atol=1e-5, rtol=1e-5)

    # Larger training-style batch: exercises the bucketed batch padding (300 -> 384).
    states_big = jax.random.normal(xkey2, (300, INPUT_STATE), dtype=jnp.float32)
    q_big = jax.block_until_ready(net_forward(states_big, padded))
    assert q_big.shape == (300, num_actions)
    assert jnp.allclose(q_big, net_forward_ref(states_big, params), atol=1e-4, rtol=1e-4)

    print("KERNEL_OK")
</pallas_src>

<mosaic_0001>
module attributes {stable_mosaic.version = 11 : i64} {
  func.func @_net_kernel(%arg0: i32, %arg1: memref<8x4xf32, #tpu.memory_space<vmem>>, %arg2: memref<4x32xf32, #tpu.memory_space<vmem>>, %arg3: memref<1x32xf32, #tpu.memory_space<vmem>>, %arg4: memref<32x128xf32, #tpu.memory_space<vmem>>, %arg5: memref<1x128xf32, #tpu.memory_space<vmem>>, %arg6: memref<128x8xf32, #tpu.memory_space<vmem>>, %arg7: memref<1x8xf32, #tpu.memory_space<vmem>>, %arg8: memref<8x8xf32, #tpu.memory_space<vmem>>) attributes {dimension_semantics = [#tpu.dimension_semantics<parallel>], iteration_bounds = array<i64: 1>, scalar_prefetch = 0 : i64, scratch_operands = 0 : i64, tpu.core_type = #tpu.core_type<tc>, window_params = [{transform_indices = @transform_0, window_bounds = array<i64: 8, 4>}, {pipeline_mode = #tpu.pipeline_mode<synchronous>, transform_indices = @transform_1, window_bounds = array<i64: 4, 32>}, {pipeline_mode = #tpu.pipeline_mode<synchronous>, transform_indices = @transform_2, window_bounds = array<i64: 1, 32>}, {pipeline_mode = #tpu.pipeline_mode<synchronous>, transform_indices = @transform_3, window_bounds = array<i64: 32, 128>}, {pipeline_mode = #tpu.pipeline_mode<synchronous>, transform_indices = @transform_4, window_bounds = array<i64: 1, 128>}, {pipeline_mode = #tpu.pipeline_mode<synchronous>, transform_indices = @transform_5, window_bounds = array<i64: 128, 8>}, {pipeline_mode = #tpu.pipeline_mode<synchronous>, transform_indices = @transform_6, window_bounds = array<i64: 1, 8>}, {transform_indices = @transform_7, window_bounds = array<i64: 8, 8>}]} {
    %c0 = arith.constant 0 : index
    %c0_0 = arith.constant 0 : index
    %0 = vector.load %arg1[%c0, %c0_0] : memref<8x4xf32, #tpu.memory_space<vmem>>, vector<8x4xf32>
    %c0_1 = arith.constant 0 : index
    %c0_2 = arith.constant 0 : index
    %1 = vector.load %arg2[%c0_1, %c0_2] : memref<4x32xf32, #tpu.memory_space<vmem>>, vector<4x32xf32>
    %c0_3 = arith.constant 0 : index
    %c0_4 = arith.constant 0 : index
    %2 = vector.load %arg3[%c0_3, %c0_4] : memref<1x32xf32, #tpu.memory_space<vmem>>, vector<1x32xf32>
    %3 = vector.shape_cast %2 : vector<1x32xf32> to vector<1x32xf32>
    %4 = vector.broadcast %3 : vector<1x32xf32> to vector<8x32xf32>
    %5 = vector.extract_strided_slice %0 {offsets = [0, 0], sizes = [8, 1], strides = [1, 1]} : vector<8x4xf32> to vector<8x1xf32>
    %6 = vector.extract_strided_slice %1 {offsets = [0, 0], sizes = [1, 32], strides = [1, 1]} : vector<4x32xf32> to vector<1x32xf32>
    %7 = vector.broadcast %5 : vector<8x1xf32> to vector<8x32xf32>
    %8 = vector.broadcast %6 : vector<1x32xf32> to vector<8x32xf32>
    %9 = arith.mulf %7, %8 : vector<8x32xf32>
    %10 = arith.addf %4, %9 : vector<8x32xf32>
    %11 = vector.extract_strided_slice %0 {offsets = [0, 1], sizes = [8, 1], strides = [1, 1]} : vector<8x4xf32> to vector<8x1xf32>
    %12 = vector.extract_strided_slice %1 {offsets = [1, 0], sizes = [1, 32], strides = [1, 1]} : vector<4x32xf32> to vector<1x32xf32>
    %13 = vector.broadcast %11 : vector<8x1xf32> to vector<8x32xf32>
    %14 = vector.broadcast %12 : vector<1x32xf32> to vector<8x32xf32>
    %15 = arith.mulf %13, %14 : vector<8x32xf32>
    %16 = arith.addf %10, %15 : vector<8x32xf32>
    %17 = vector.extract_strided_slice %0 {offsets = [0, 2], sizes = [8, 1], strides = [1, 1]} : vector<8x4xf32> to vector<8x1xf32>
    %18 = vector.extract_strided_slice %1 {offsets = [2, 0], sizes = [1, 32], strides = [1, 1]} : vector<4x32xf32> to vector<1x32xf32>
    %19 = vector.broadcast %17 : vector<8x1xf32> to vector<8x32xf32>
    %20 = vector.broadcast %18 : vector<1x32xf32> to vector<8x32xf32>
    %21 = arith.mulf %19, %20 : vector<8x32xf32>
    %22 = arith.addf %16, %21 : vector<8x32xf32>
    %23 = vector.extract_strided_slice %0 {offsets = [0, 3], sizes = [8, 1], strides = [1, 1]} : vector<8x4xf32> to vector<8x1xf32>
    %24 = vector.extract_strided_slice %1 {offsets = [3, 0], sizes = [1, 32], strides = [1, 1]} : vector<4x32xf32> to vector<1x32xf32>
    %25 = vector.broadcast %23 : vector<8x1xf32> to vector<8x32xf32>
    %26 = vector.broadcast %24 : vector<1x32xf32> to vector<8x32xf32>
    %27 = arith.mulf %25, %26 : vector<8x32xf32>
    %28 = arith.addf %22, %27 : vector<8x32xf32>
    %cst = arith.constant 0.000000e+00 : f32
    %29 = vector.broadcast %cst : f32 to vector<8x32xf32>
    %30 = arith.maximumf %28, %29 : vector<8x32xf32>
    %c0_5 = arith.constant 0 : index
    %c0_6 = arith.constant 0 : index
    %31 = vector.load %arg4[%c0_5, %c0_6] : memref<32x128xf32, #tpu.memory_space<vmem>>, vector<32x128xf32>
    %cst_7 = arith.constant dense<0.000000e+00> : vector<8x128xf32>
    %32 = tpu.matmul %30, %31, %cst_7 {dimension_numbers = #tpu.dot_dimension_numbers<[1], [0], [0], [1], [0, 0, 1, 1], [], []>} : vector<8x32xf32>, vector<32x128xf32>, vector<8x128xf32> -> vector<8x128xf32>
    %c0_8 = arith.constant 0 : index
    %c0_9 = arith.constant 0 : index
    %33 = vector.load %arg5[%c0_8, %c0_9] : memref<1x128xf32, #tpu.memory_space<vmem>>, vector<1x128xf32>
    %34 = vector.broadcast %33 : vector<1x128xf32> to vector<8x128xf32>
    %35 = arith.addf %32, %34 : vector<8x128xf32>
    %cst_10 = arith.constant 0.000000e+00 : f32
    %36 = vector.broadcast %cst_10 : f32 to vector<8x128xf32>
    %37 = arith.maximumf %35, %36 : vector<8x128xf32>
    %c0_11 = arith.constant 0 : index
    %c0_12 = arith.constant 0 : index
    %38 = vector.load %arg6[%c0_11, %c0_12] : memref<128x8xf32, #tpu.memory_space<vmem>>, vector<128x8xf32>
    %cst_13 = arith.constant dense<0.000000e+00> : vector<8x8xf32>
    %39 = tpu.matmul %37, %38, %cst_13 {dimension_numbers = #tpu.dot_dimension_numbers<[1], [0], [0], [1], [0, 0, 1, 1], [], []>} : vector<8x128xf32>, vector<128x8xf32>, vector<8x8xf32> -> vector<8x8xf32>
    %c0_14 = arith.constant 0 : index
    %c0_15 = arith.constant 0 : index
    %40 = vector.load %arg7[%c0_14, %c0_15] : memref<1x8xf32, #tpu.memory_space<vmem>>, vector<1x8xf32>
    %41 = vector.broadcast %40 : vector<1x8xf32> to vector<8x8xf32>
    %42 = arith.addf %39, %41 : vector<8x8xf32>
    %c0_16 = arith.constant 0 : index
    %c0_17 = arith.constant 0 : index
    %43 = vector.load %arg8[%c0_16, %c0_17] : memref<8x8xf32, #tpu.memory_space<vmem>>, vector<8x8xf32>
    tpu.vector_store %arg8[%c0_16, %c0_17], %42 {strides = array<i32>} : memref<8x8xf32, #tpu.memory_space<vmem>>, vector<8x8xf32>,
    return
  }
  func.func @transform_0(%arg0: i32) -> (i32, i32) {
    %c0_i32 = arith.constant 0 : i32
    %c0_i32_0 = arith.constant 0 : i32
    return %arg0, %c0_i32 : i32, i32
  }
  func.func @transform_1(%arg0: i32) -> (i32, i32) {
    %c0_i32 = arith.constant 0 : i32
    %c0_i32_0 = arith.constant 0 : i32
    %c0_i32_1 = arith.constant 0 : i32
    return %c0_i32, %c0_i32_0 : i32, i32
  }
  func.func @transform_2(%arg0: i32) -> (i32, i32) {
    %c0_i32 = arith.constant 0 : i32
    %c0_i32_0 = arith.constant 0 : i32
    %c0_i32_1 = arith.constant 0 : i32
    return %c0_i32, %c0_i32_0 : i32, i32
  }
  func.func @transform_3(%arg0: i32) -> (i32, i32) {
    %c0_i32 = arith.constant 0 : i32
    %c0_i32_0 = arith.constant 0 : i32
    %c0_i32_1 = arith.constant 0 : i32
    return %c0_i32, %c0_i32_0 : i32, i32
  }
  func.func @transform_4(%arg0: i32) -> (i32, i32) {
    %c0_i32 = arith.constant 0 : i32
    %c0_i32_0 = arith.constant 0 : i32
    %c0_i32_1 = arith.constant 0 : i32
    return %c0_i32, %c0_i32_0 : i32, i32
  }
  func.func @transform_5(%arg0: i32) -> (i32, i32) {
    %c0_i32 = arith.constant 0 : i32
    %c0_i32_0 = arith.constant 0 : i32
    %c0_i32_1 = arith.constant 0 : i32
    return %c0_i32, %c0_i32_0 : i32, i32
  }
  func.func @transform_6(%arg0: i32) -> (i32, i32) {
    %c0_i32 = arith.constant 0 : i32
    %c0_i32_0 = arith.constant 0 : i32
    %c0_i32_1 = arith.constant 0 : i32
    return %c0_i32, %c0_i32_0 : i32, i32
  }
  func.func @transform_7(%arg0: i32) -> (i32, i32) {
    %c0_i32 = arith.constant 0 : i32
    %c0_i32_0 = arith.constant 0 : i32
    return %arg0, %c0_i32 : i32, i32
  }
}

</mosaic_0001>

<llo_original>
// kernel: tpu_custom_call.1
$region0: #{tpu_custom_call.1}
  #allocation0 [shape = 'u32[]', space=smem, size = 0x4, offset = 0x4, fixed_abs, tag = 'smem constant byte address 0x4 - core index']
  #allocation1 [shape = 'u32[144,128]{1,0:T(1,128)}', space=vmem, size = 0x12000, scoped, tag = 'internal scratch']
  %s0 = inlined_call_operand.vmem [shape: f32[8,4], index: 0, kind: input, shape index: {}]
  %s1 = inlined_call_operand.vmem [shape: f32[4,32], index: 1, kind: input, shape index: {}]
  %s2 = inlined_call_operand.vmem [shape: f32[1,32], index: 2, kind: input, shape index: {}]
  %s3 = inlined_call_operand.vmem [shape: f32[32,128], index: 3, kind: input, shape index: {}]
  %s4 = inlined_call_operand.vmem [shape: f32[1,128], index: 4, kind: input, shape index: {}]
  %s5 = inlined_call_operand.vmem [shape: f32[128,8], index: 5, kind: input, shape index: {}]
  %s6 = inlined_call_operand.vmem [shape: f32[1,8], index: 6, kind: input, shape index: {}]
  %s7 = inlined_call_operand.hbm [shape: f32[8,8], index: 7, kind: output, shape index: {}]
  %s8 = sld [smem:[#allocation0]]
  $region38: #{tpu_custom_call.1} parent=0
    _
  %s10 = ssub.s32 1, %s8
  %s11 = scalar_select 0, %s10, %s8
  $region1: #{tpu_custom_call.1} parent=0
    #allocation2 [shape = 'u8[4096]{0}', space=vmem, size = 0x1000, scoped, tag = 'output window, operand 0, single buffered']
    #allocation3 [shape = 's32[1]{0}', space=sflag, size = 0x4, scoped, tag = 'scoped memory for tpu_custom_call.1']
    %12 = vsyncpa [#allocation3], 0
    // Predicated region
    $region2: #{tpu_custom_call.1} parent=1 // pred_check
      _
    $region3: #{tpu_custom_call.1} parent=1 // pred_check_branch
      %14 = sbr.rel (0) target = $region5
    $region4: #{tpu_custom_call.1} parent=1 // pred_region
      _
    $region5: #{tpu_custom_call.1} parent=1 // pred_fallthru
      _
    // Predicated region
    $region6: #{tpu_custom_call.1} parent=1 // pred_check
      _
    $region7: #{tpu_custom_call.1} parent=1 // pred_check_branch
      %16 = sbr.rel (0) target = $region9
    $region8: #{tpu_custom_call.1} parent=1 // pred_region
      _
    $region9: #{tpu_custom_call.1} parent=1 // pred_fallthru
      _
    // Predicated region
    $region10: #{tpu_custom_call.1} parent=1 // pred_check
      _
    $region11: #{tpu_custom_call.1} parent=1 // pred_check_branch
      %18 = sbr.rel (0) target = $region13
    $region12: #{tpu_custom_call.1} parent=1 // pred_region
      _
    $region13: #{tpu_custom_call.1} parent=1 // pred_fallthru
      _
    // Predicated region
    $region14: #{tpu_custom_call.1} parent=1 // pred_check
      _
    $region15: #{tpu_custom_call.1} parent=1 // pred_check_branch
      %20 = sbr.rel (0) target = $region17
    $region16: #{tpu_custom_call.1} parent=1 // pred_region
      _
    $region17: #{tpu_custom_call.1} parent=1 // pred_fallthru
      _
    // Predicated region
    $region18: #{tpu_custom_call.1} parent=1 // pred_check
      _
    $region19: #{tpu_custom_call.1} parent=1 // pred_check_branch
      %22 = sbr.rel (0) target = $region21
    $region20: #{tpu_custom_call.1} parent=1 // pred_region
      _
    $region21: #{tpu_custom_call.1} parent=1 // pred_fallthru
      _
    // Predicated region
    $region22: #{tpu_custom_call.1} parent=1 // pred_check
      _
    $region23: #{tpu_custom_call.1} parent=1 // pred_check_branch
      %24 = sbr.rel (0) target = $region25
    $region24: #{tpu_custom_call.1} parent=1 // pred_region
      _
    $region25: #{tpu_custom_call.1} parent=1 // pred_fallthru
      _
    // Predicated region
    $region26: #{tpu_custom_call.1} parent=1 // pred_check
      _
    $region27: #{tpu_custom_call.1} parent=1 // pred_check_branch
      %26 = sbr.rel (0) target = $region29
    $region28: #{tpu_custom_call.1} parent=1 // pred_region
      _
    $region29: #{tpu_custom_call.1} parent=1 // pred_fallthru
      _
    %v27 = vld [vmem:[%s0] sm:$0xff]
    %v28 = vld [vmem:[%s1] sm:$0xf]
    %v29 = vld [vmem:[%s2] sm:$0x1]
    %v31 = vlaneseq
    %v32 = vshrl.u32 %v31, 7
    %v33 = vsub.s32 0, %v32
    %v34 = vrot.slane %v29, %v33
    %37 = vset.pattern.permute.xlu0 0
    %38 = vperm.xlu0 %37, %v27
    %v39 = vpop.permute.xlu0 %38
    %v41 = vlaneseq
    %v42 = vshrl.u32 %v41, 7
    %v43 = vsub.s32 0, %v42
    %v44 = vrot.slane %v28, %v43
    %v45 = vmul.f32 %v39, %v44
    %v46 = vadd.f32 %v34, %v45
    %47 = vset.pattern.permute.xlu0 1
    %48 = vperm.xlu0 %47, %v27
    %v49 = vpop.permute.xlu0 %48
    %v51 = vlaneseq
    %v52 = vshrl.u32 %v51, 7
    %v53 = vsub.s32 1, %v52
    %v54 = vrot.slane %v28, %v53
    %v55 = vmul.f32 %v49, %v54
    %v56 = vadd.f32 %v46, %v55
    %57 = vset.pattern.permute.xlu0 2
    %58 = vperm.xlu0 %57, %v27
    %v59 = vpop.permute.xlu0 %58
    %v61 = vlaneseq
    %v62 = vshrl.u32 %v61, 7
    %v63 = vsub.s32 2, %v62
    %v64 = vrot.slane %v28, %v63
    %v65 = vmul.f32 %v59, %v64
    %v66 = vadd.f32 %v56, %v65
    %67 = vset.pattern.permute.xlu0 3
    %68 = vperm.xlu0 %67, %v27
    %v69 = vpop.permute.xlu0 %68
    %v71 = vlaneseq
    %v72 = vshrl.u32 %v71, 7
    %v73 = vsub.s32 3, %v72
    %v74 = vrot.slane %v28, %v73
    %v75 = vmul.f32 %v69, %v74
    %v76 = vadd.f32 %v66, %v75
    %v77 = vmax.f32 %v76, 0.0
    %v78 = vld [vmem:[%s3] sm:$0xff]
    %v79 = vld [vmem:[%s3 + $0x8] sm:$0xff]
    %v80 = vld [vmem:[%s3 + $0x10] sm:$0xff]
    %v81 = vld [vmem:[%s3 + $0x18] sm:$0xff]
    %v82 = vld [vmem:[%s4] sm:$0x1]
    %v84 = vlaneseq
    %v85 = vshrl.u32 %v84, 7
    %v86 = vsub.s32 0, %v85
    %v87 = vrot.slane %v82, %v86
    %vm89 = vcmask 261120
    %v91 = vsel %vm89, %v77, 0
    %93 = vmatprep.subr.mxu0 0.0
    %94 = vmatpush1.msra.mxu0 %v78
    %95 = vmatprep.subr.mxu0 0.0
    %96 = vmatpush1.msra.mxu0 %v79
    %97 = vmatprep.subr.mxu0 0.0
    %98 = vmatpush1.msra.mxu0 %v80
    %99 = vmatprep.subr.mxu0 0.0
    %100 = vmatpush1.msra.mxu0 %v81
    %101 = vmatprep.subr.mxu0 0.0
    %102 = vmatpush1.msra.mxu0 0.0
    %103 = vmatprep.subr.mxu0 0.0
    %104 = vmatpush1.msra.mxu0 0.0
    %105 = vmatprep.subr.mxu0 0.0
    %106 = vmatpush1.msra.mxu0 0.0
    %107 = vmatprep.subr.mxu0 0.0
    %108 = vmatpush1.msra.mxu0 0.0
    %109 = vmatprep.subr.mxu0 0.0
    %110 = vmatpush1.msra.mxu0 0.0
    %111 = vmatprep.subr.mxu0 0.0
    %112 = vmatpush1.msra.mxu0 0.0
    %113 = vmatprep.subr.mxu0 0.0
    %114 = vmatpush1.msra.mxu0 0.0
    %115 = vmatprep.subr.mxu0 0.0
    %116 = vmatpush1.msra.mxu0 0.0
    %117 = vmatprep.subr.mxu0 0.0
    %118 = vmatpush1.msra.mxu0 0.0
    %119 = vmatprep.subr.mxu0 0.0
    %120 = vmatpush1.msra.mxu0 0.0
    %121 = vmatprep.subr.mxu0 0.0
    %122 = vmatpush1.msra.mxu0 0.0
    %123 = vmatprep.subr.mxu0 0.0
    %124 = vmatpush1.msra.mxu0 0.0
    %125 = vmatprep.subr.mxu0 0.0
    %126 = vmatpush1.msra.mxu0 0.0
    %127 = vmatprep.subr.mxu0 0.0
    %128 = vmatpush1.msra.mxu0 0.0
    %129 = vmatprep.subr.mxu0 0.0
    %130 = vmatpush1.msra.mxu0 0.0
    %131 = vmatprep.subr.mxu0 0.0
    %132 = vmatpush1.msra.mxu0 0.0
    %133 = vmatprep.subr.mxu0 0.0
    %134 = vmatpush1.msra.mxu0 0.0
    %135 = vmatprep.subr.mxu0 0.0
    %136 = vmatpush1.msra.mxu0 0.0
    %137 = vmatprep.subr.mxu0 0.0
    %138 = vmatpush1.msra.mxu0 0.0
    %139 = vmatprep.subr.mxu0 0.0
    %140 = vmatpush1.msra.mxu0 0.0
    %141 = vmatprep.subr.mxu0 0.0
    %142 = vmatpush1.msra.mxu0 0.0
    %143 = vmatprep.subr.mxu0 0.0
    %144 = vmatpush1.msra.mxu0 0.0
    %145 = vmatprep.subr.mxu0 0.0
    %146 = vmatpush1.msra.mxu0 0.0
    %147 = vmatprep.subr.mxu0 0.0
    %148 = vmatpush1.msra.mxu0 0.0
    %149 = vmatprep.subr.mxu0 0.0
    %150 = vmatpush1.msra.mxu0 0.0
    %151 = vmatprep.subr.mxu0 0.0
    %152 = vmatpush1.msra.mxu0 0.0
    %153 = vmatprep.subr.mxu0 0.0
    %154 = vmatpush1.msra.mxu0 0.0
    %155 = vmatprep.subr.mxu0 0.0
    %156 = vmatpush1.msra.mxu0 0.0
    %157 = vmatprep.mubr.f32.mxu0 0.0
    %158 = vmatmul.mubr.f32.gmra.mrb[0].mxu0 %v91
    %v159 = vpop.f32.mrb[0].mxu0
    %v160 = vadd.f32 %v87, %v159
    %v161 = vpop.f32.mrb[0].mxu0
    %162 = vdwg.mxu0
    %v163 = vmax.f32 %v160, 0.0
    %v164 = vld [vmem:[%s5] sm:$0xff]
    %v165 = vld [vmem:[%s5 + $0x8] sm:$0xff]
    %v166 = vld [vmem:[%s5 + $0x10] sm:$0xff]
    %v167 = vld [vmem:[%s5 + $0x18] sm:$0xff]
    %v168 = vld [vmem:[%s5 + $0x20] sm:$0xff]
    %v169 = vld [vmem:[%s5 + $0x28] sm:$0xff]
    %v170 = vld [vmem:[%s5 + $0x30] sm:$0xff]
    %v171 = vld [vmem:[%s5 + $0x38] sm:$0xff]
    %v172 = vld [vmem:[%s5 + $0x40] sm:$0xff]
    %v173 = vld [vmem:[%s5 + $0x48] sm:$0xff]
    %v174 = vld [vmem:[%s5 + $0x50] sm:$0xff]
    %v175 = vld [vmem:[%s5 + $0x58] sm:$0xff]
    %v176 = vld [vmem:[%s5 + $0x60] sm:$0xff]
    %v177 = vld [vmem:[%s5 + $0x68] sm:$0xff]
    %v178 = vld [vmem:[%s5 + $0x70] sm:$0xff]
    %v179 = vld [vmem:[%s5 + $0x78] sm:$0xff]
    %v180 = vld [vmem:[%s6] sm:$0x1]
    %v182 = vlaneseq
    %v183 = vshrl.u32 %v182, 7
    %v184 = vsub.s32 0, %v183
    %v185 = vrot.slane %v180, %v184
    %187 = vmatprep.subr.mxu0 0.0
    %188 = vmatpush1.msra.mxu0 %v164
    %189 = vmatprep.subr.mxu0 0.0
    %190 = vmatpush1.msra.mxu0 %v165
    %191 = vmatprep.subr.mxu0 0.0
    %192 = vmatpush1.msra.mxu0 %v166
    %193 = vmatprep.subr.mxu0 0.0
    %194 = vmatpush1.msra.mxu0 %v167
    %195 = vmatprep.subr.mxu0 0.0
    %196 = vmatpush1.msra.mxu0 %v168
    %197 = vmatprep.subr.mxu0 0.0
    %198 = vmatpush1.msra.mxu0 %v169
    %199 = vmatprep.subr.mxu0 0.0
    %200 = vmatpush1.msra.mxu0 %v170
    %201 = vmatprep.subr.mxu0 0.0
    %202 = vmatpush1.msra.mxu0 %v171
    %203 = vmatprep.subr.mxu0 0.0
    %204 = vmatpush1.msra.mxu0 %v172
    %205 = vmatprep.subr.mxu0 0.0
    %206 = vmatpush1.msra.mxu0 %v173
    %207 = vmatprep.subr.mxu0 0.0
    %208 = vmatpush1.msra.mxu0 %v174
    %209 = vmatprep.subr.mxu0 0.0
    %210 = vmatpush1.msra.mxu0 %v175
    %211 = vmatprep.subr.mxu0 0.0
    %212 = vmatpush1.msra.mxu0 %v176
    %213 = vmatprep.subr.mxu0 0.0
    %214 = vmatpush1.msra.mxu0 %v177
    %215 = vmatprep.subr.mxu0 0.0
    %216 = vmatpush1.msra.mxu0 %v178
    %217 = vmatprep.subr.mxu0 0.0
    %218 = vmatpush1.msra.mxu0 %v179
    %219 = vmatprep.subr.mxu0 0.0
    %220 = vmatpush1.msra.mxu0 0.0
    %221 = vmatprep.subr.mxu0 0.0
    %222 = vmatpush1.msra.mxu0 0.0
    %223 = vmatprep.subr.mxu0 0.0
    %224 = vmatpush1.msra.mxu0 0.0
    %225 = vmatprep.subr.mxu0 0.0
    %226 = vmatpush1.msra.mxu0 0.0
    %227 = vmatprep.subr.mxu0 0.0
    %228 = vmatpush1.msra.mxu0 0.0
    %229 = vmatprep.subr.mxu0 0.0
    %230 = vmatpush1.msra.mxu0 0.0
    %231 = vmatprep.subr.mxu0 0.0
    %232 = vmatpush1.msra.mxu0 0.0
    %233 = vmatprep.subr.mxu0 0.0
    %234 = vmatpush1.msra.mxu0 0.0
    %235 = vmatprep.subr.mxu0 0.0
    %236 = vmatpush1.msra.mxu0 0.0
    %237 = vmatprep.subr.mxu0 0.0
    %238 = vmatpush1.msra.mxu0 0.0
    %239 = vmatprep.subr.mxu0 0.0
    %240 = vmatpush1.msra.mxu0 0.0
    %241 = vmatprep.subr.mxu0 0.0
    %242 = vmatpush1.msra.mxu0 0.0
    %243 = vmatprep.subr.mxu0 0.0
    %244 = vmatpush1.msra.mxu0 0.0
    %245 = vmatprep.subr.mxu0 0.0
    %246 = vmatpush1.msra.mxu0 0.0
    %247 = vmatprep.subr.mxu0 0.0
    %248 = vmatpush1.msra.mxu0 0.0
    %249 = vmatprep.subr.mxu0 0.0
    %250 = vmatpush1.msra.mxu0 0.0
    %251 = vmatprep.mubr.f32.mxu0 0.0
    %252 = vmatmul.mubr.f32.gmra.mrb[0].mxu0 %v163
    %v253 = vpop.f32.mrb[0].mxu0
    %v254 = vadd.f32 %v185, %v253
    %v255 = vpop.f32.mrb[0].mxu0
    %256 = vdwg.mxu0
    %vm257 = vcmask 64512
    %258 = vst.msk [vmem:[#allocation2] sm:$0xff] %vm257, %v254
    // Predicated region
    $region30: #{tpu_custom_call.1} parent=1 // pred_check
      _
    $region31: #{tpu_custom_call.1} parent=1 // pred_check_branch
      %260 = sbr.rel (0) target = $region33
    $region32: #{tpu_custom_call.1} parent=1 // pred_region
      %s262 = ssub.s32 128, 128
      %263 = vsyncadd [#allocation3], %s262
      %s265 = sshll.u32 [#allocation2], 4
      %s266 = int_to_ptr.vmem [resolvable:$true] %s265
      %268 = dma.vmem_to_hbm [thread:$0]  %s266, 128, %s7, [#allocation3]
    $region33: #{tpu_custom_call.1} parent=1 // pred_fallthru
      _
    // Predicated region
    $region34: #{tpu_custom_call.1} parent=1 // pred_check
      _
    $region35: #{tpu_custom_call.1} parent=1 // pred_check_branch
      %270 = sbr.rel (0) target = $region37
    $region36: #{tpu_custom_call.1} parent=1 // pred_region
      %271 = dma.done [#allocation3], 128
    $region37: #{tpu_custom_call.1} parent=1 // pred_fallthru
      _
    %272 = vsyncpa [#allocation3], 1

</llo_original>
